<compile_context>
chip_gen: v7x
topology: tpu7x:2x2x1
jax: 0.10.0
libtpu: 0.0.40
codegen_flags: <defaults>
</compile_context>

<pallas_src>
import jax
import jax.numpy as jnp
from jax.experimental import pallas as pl
from jax.experimental.pallas import tpu as pltpu

HIDDEN = 256


def _critic_kernel(
    sa_ref,                              # (TB, in_dim)  compute dtype
    w14_ref, b14_ref,                    # (in_dim, 512) cd, (1, 512) f32
    w2_ref, b2_ref, w5_ref, b5_ref,      # (256, 256) cd, (1, 256) f32  (x2 towers)
    w3_ref, b3_ref, w6_ref, b6_ref,      # (1, 256) f32, (1, 1) f32     (x2 heads)
    q1_ref, q2_ref,                      # (TB, 1) f32 each
):
    cd = w14_ref.dtype  # compute dtype of the MXU operands (f32 or bf16)

    # Layer 1, both towers fused along the output dim: one (TB,in_dim)x(in_dim,512)
    # matmul; accumulation is f32, bias/relu in f32.
    h = jnp.dot(sa_ref[...], w14_ref[...], preferred_element_type=jnp.float32)
    h = jnp.maximum(h + b14_ref[...], 0.0)

    # Split towers (256 is lane-tile aligned) and cast to the MXU compute dtype.
    h1 = h[:, :HIDDEN].astype(cd)
    h2 = h[:, HIDDEN:].astype(cd)

    # Layer 2, per tower (full 256x256 MXU tiles, f32 accumulation).
    h1 = jnp.maximum(
        jnp.dot(h1, w2_ref[...], preferred_element_type=jnp.float32) + b2_ref[...], 0.0
    )
    h2 = jnp.maximum(
        jnp.dot(h2, w5_ref[...], preferred_element_type=jnp.float32) + b5_ref[...], 0.0
    )

    # Output heads: 256 -> 1 per tower as VPU multiply + XLU lane reduction (f32),
    # instead of an MXU matmul with only 2 useful output lanes.
    q1_ref[...] = jnp.sum(h1 * w3_ref[...], axis=-1, keepdims=True) + b3_ref[...]
    q2_ref[...] = jnp.sum(h2 * w6_ref[...], axis=-1, keepdims=True) + b6_ref[...]


def fuse_params(params, compute_dtype=jnp.float32):
    """Fold the 6 Linear layers into the fused kernel layout.

    Matmul weights are cast to `compute_dtype` (use jnp.bfloat16 on v6e/v7x for MXU
    throughput; accumulation stays f32 inside the kernel). Biases and head rows stay f32.
    """
    w1, b1, w2, b2, w3, b3, w4, b4, w5, b5, w6, b6 = params
    cd = compute_dtype
    w14 = jnp.concatenate([w1, w4], axis=1).astype(cd)   # (in_dim, 512)
    b14 = jnp.concatenate([b1, b4], axis=1)              # (1, 512) f32
    return (
        w14, b14,
        w2.astype(cd), b2,
        w5.astype(cd), b5,
        w3.reshape(1, HIDDEN).astype(jnp.float32), b3,   # head rows stay f32 (VPU path)
        w6.reshape(1, HIDDEN).astype(jnp.float32), b6,
    )


def _choose_batch_tile(B, batch_tile):
    """Batch tile: full batch if tiny; otherwise >=2 grid steps (v7x dual TC), tiles
    multiple of 8, capped at `batch_tile` (must be a multiple of 8)."""
    if B <= 16:
        return B
    half = -(-B // 2)            # cdiv(B, 2)
    half = -(-half // 8) * 8     # round up to a multiple of 8
    return min(batch_tile, half)


def critic_forward(state, action, fused_params, *, batch_tile=1024):
    """state: (B, state_dim), action: (B, action_dim) -> (q1, q2), each (B, 1) f32."""
    w14 = fused_params[0]
    cd = w14.dtype
    # Tiny HBM concat (B * in_dim elements) — folds the [state|action] concat so layer 1
    # is a single matmul; also casts activations to the compute dtype once.
    sa = jnp.concatenate(
        [state.astype(jnp.float32), action.astype(jnp.float32)], axis=1
    ).astype(cd)
    B, in_dim = sa.shape

    TB = _choose_batch_tile(B, batch_tile)
    grid = (pl.cdiv(B, TB),)

    # Activations are batch-tiled; weights/biases are full-extent (grid-invariant,
    # resident in VMEM across the whole grid).
    in_specs = [pl.BlockSpec((TB, in_dim), lambda i: (i, 0))] + [
        pl.BlockSpec(w.shape, lambda i: (0, 0)) for w in fused_params
    ]
    out_specs = (
        pl.BlockSpec((TB, 1), lambda i: (i, 0)),
        pl.BlockSpec((TB, 1), lambda i: (i, 0)),
    )

    q1, q2 = pl.pallas_call(
        _critic_kernel,
        out_shape=(
            jax.ShapeDtypeStruct((B, 1), jnp.float32),
            jax.ShapeDtypeStruct((B, 1), jnp.float32),
        ),
        grid=grid,
        in_specs=in_specs,
        out_specs=out_specs,
        compiler_params=pltpu.CompilerParams(dimension_semantics=("parallel",)),
    )(sa, *fused_params)

    return q1, q2


def init_params(key, state_dim, action_dim):
    """nn.Linear-style init; weights stored as [in_features, out_features]."""
    in_dim = state_dim + action_dim
    dims = [
        (in_dim, HIDDEN),  # l1
        (HIDDEN, HIDDEN),  # l2
        (HIDDEN, 1),       # l3
        (in_dim, HIDDEN),  # l4
        (HIDDEN, HIDDEN),  # l5
        (HIDDEN, 1),       # l6
    ]
    params = []
    for i, (fan_in, fan_out) in enumerate(dims):
        kw, kb, key = jax.random.split(jax.random.fold_in(key, i), 3)
        bound = 1.0 / jnp.sqrt(fan_in)
        w = jax.random.uniform(kw, (fan_in, fan_out), jnp.float32, -bound, bound)
        b = jax.random.uniform(kb, (1, fan_out), jnp.float32, -bound, bound)
        params += [w, b]
    return tuple(params)


def critic_reference(state, action, params, compute_dtype=jnp.float32):
    """Pure-JAX reference. With compute_dtype=f32 this is exactly the PyTorch
    Critic.forward; with bf16 it mirrors the kernel's cast pattern (f32 accumulation)."""
    cd = compute_dtype
    w1, b1, w2, b2, w3, b3, w4, b4, w5, b5, w6, b6 = params
    sa = jnp.concatenate([state, action], axis=1).astype(jnp.float32).astype(cd)

    def layer(x, w, b):
        y = jnp.dot(x.astype(cd), w.astype(cd), preferred_element_type=jnp.float32) + b
        return jax.nn.relu(y)

    h1 = layer(sa, w1, b1)
    h1 = layer(h1, w2, b2)
    q1 = jnp.dot(h1, w3, preferred_element_type=jnp.float32) + b3
    h2 = layer(sa, w4, b4)
    h2 = layer(h2, w5, b5)
    q2 = jnp.dot(h2, w6, preferred_element_type=jnp.float32) + b6
    return q1, q2


if __name__ == "__main__":
    key = jax.random.PRNGKey(0)
    state_dim, action_dim = 12, 4

    k_s, k_a, k_p = jax.random.split(key, 3)
    params = init_params(k_p, state_dim, action_dim)

    # --- small batch, f32 compute (grid of 1) ---
    B = 8
    state = jax.random.normal(k_s, (B, state_dim), jnp.float32)
    action = jax.random.normal(k_a, (B, action_dim), jnp.float32)
    fused_f32 = fuse_params(params, jnp.float32)

    q1, q2 = critic_forward(state, action, fused_f32)
    jax.block_until_ready((q1, q2))
    r1, r2 = critic_reference(state, action, params)
    assert q1.shape == (B, 1) and q2.shape == (B, 1)
    assert jnp.allclose(q1, r1, atol=1e-4, rtol=1e-4), float(jnp.max(jnp.abs(q1 - r1)))
    assert jnp.allclose(q2, r2, atol=1e-4, rtol=1e-4), float(jnp.max(jnp.abs(q2 - r2)))

    # --- multi-tile grid (2 "parallel" steps + partial last tile), f32 compute ---
    B2 = 40
    state2 = jax.random.normal(jax.random.fold_in(key, 1), (B2, state_dim), jnp.float32)
    action2 = jax.random.normal(jax.random.fold_in(key, 2), (B2, action_dim), jnp.float32)
    q1, q2 = critic_forward(state2, action2, fused_f32)
    r1, r2 = critic_reference(state2, action2, params)
    jax.block_until_ready((q1, q2))
    assert jnp.allclose(q1, r1, atol=1e-4, rtol=1e-4), float(jnp.max(jnp.abs(q1 - r1)))
    assert jnp.allclose(q2, r2, atol=1e-4, rtol=1e-4), float(jnp.max(jnp.abs(q2 - r2)))

    # --- bf16 MXU path (v6e/v7x), f32 accumulation; compared against a bf16-matched ref ---
    fused_bf16 = fuse_params(params, jnp.bfloat16)
    q1b, q2b = critic_forward(state2, action2, fused_bf16)
    jax.block_until_ready((q1b, q2b))
    rb1, rb2 = critic_reference(state2, action2, params, compute_dtype=jnp.bfloat16)
    assert jnp.allclose(q1b, rb1, atol=5e-3, rtol=5e-3), float(jnp.max(jnp.abs(q1b - rb1)))
    assert jnp.allclose(q2b, rb2, atol=5e-3, rtol=5e-3), float(jnp.max(jnp.abs(q2b - rb2)))

    print("KERNEL_OK")
</pallas_src>

<mosaic_0001>
module attributes {stable_mosaic.version = 11 : i64} {
  func.func @_critic_kernel(%arg0: i32, %arg1: memref<8x16xf32, #tpu.memory_space<vmem>>, %arg2: memref<16x512xf32, #tpu.memory_space<vmem>>, %arg3: memref<1x512xf32, #tpu.memory_space<vmem>>, %arg4: memref<256x256xf32, #tpu.memory_space<vmem>>, %arg5: memref<1x256xf32, #tpu.memory_space<vmem>>, %arg6: memref<256x256xf32, #tpu.memory_space<vmem>>, %arg7: memref<1x256xf32, #tpu.memory_space<vmem>>, %arg8: memref<1x256xf32, #tpu.memory_space<vmem>>, %arg9: memref<1x1xf32, #tpu.memory_space<vmem>>, %arg10: memref<1x256xf32, #tpu.memory_space<vmem>>, %arg11: memref<1x1xf32, #tpu.memory_space<vmem>>, %arg12: memref<8x1xf32, #tpu.memory_space<vmem>>, %arg13: memref<8x1xf32, #tpu.memory_space<vmem>>) attributes {dimension_semantics = [#tpu.dimension_semantics<parallel>], iteration_bounds = array<i64: 1>, scalar_prefetch = 0 : i64, scratch_operands = 0 : i64, tpu.core_type = #tpu.core_type<tc>, window_params = [{transform_indices = @transform_0, window_bounds = array<i64: 8, 16>}, {pipeline_mode = #tpu.pipeline_mode<synchronous>, transform_indices = @transform_1, window_bounds = array<i64: 16, 512>}, {pipeline_mode = #tpu.pipeline_mode<synchronous>, transform_indices = @transform_2, window_bounds = array<i64: 1, 512>}, {pipeline_mode = #tpu.pipeline_mode<synchronous>, transform_indices = @transform_3, window_bounds = array<i64: 256, 256>}, {pipeline_mode = #tpu.pipeline_mode<synchronous>, transform_indices = @transform_4, window_bounds = array<i64: 1, 256>}, {pipeline_mode = #tpu.pipeline_mode<synchronous>, transform_indices = @transform_5, window_bounds = array<i64: 256, 256>}, {pipeline_mode = #tpu.pipeline_mode<synchronous>, transform_indices = @transform_6, window_bounds = array<i64: 1, 256>}, {pipeline_mode = #tpu.pipeline_mode<synchronous>, transform_indices = @transform_7, window_bounds = array<i64: 1, 256>}, {pipeline_mode = #tpu.pipeline_mode<synchronous>, transform_indices = @transform_8, window_bounds = array<i64: 1, 1>}, {pipeline_mode = #tpu.pipeline_mode<synchronous>, transform_indices = @transform_9, window_bounds = array<i64: 1, 256>}, {pipeline_mode = #tpu.pipeline_mode<synchronous>, transform_indices = @transform_10, window_bounds = array<i64: 1, 1>}, {transform_indices = @transform_11, window_bounds = array<i64: 8, 1>}, {transform_indices = @transform_12, window_bounds = array<i64: 8, 1>}]} {
    %c0 = arith.constant 0 : index
    %c0_0 = arith.constant 0 : index
    %0 = vector.load %arg1[%c0, %c0_0] : memref<8x16xf32, #tpu.memory_space<vmem>>, vector<8x16xf32>
    %c0_1 = arith.constant 0 : index
    %c0_2 = arith.constant 0 : index
    %1 = vector.load %arg2[%c0_1, %c0_2] : memref<16x512xf32, #tpu.memory_space<vmem>>, vector<16x512xf32>
    %cst = arith.constant dense<0.000000e+00> : vector<8x512xf32>
    %2 = tpu.matmul %0, %1, %cst {dimension_numbers = #tpu.dot_dimension_numbers<[1], [0], [0], [1], [0, 0, 1, 1], [], []>} : vector<8x16xf32>, vector<16x512xf32>, vector<8x512xf32> -> vector<8x512xf32>
    %c0_3 = arith.constant 0 : index
    %c0_4 = arith.constant 0 : index
    %3 = vector.load %arg3[%c0_3, %c0_4] : memref<1x512xf32, #tpu.memory_space<vmem>>, vector<1x512xf32>
    %4 = vector.broadcast %3 : vector<1x512xf32> to vector<8x512xf32>
    %5 = arith.addf %2, %4 : vector<8x512xf32>
    %cst_5 = arith.constant 0.000000e+00 : f32
    %6 = vector.broadcast %cst_5 : f32 to vector<8x512xf32>
    %7 = arith.maximumf %5, %6 : vector<8x512xf32>
    %8 = vector.extract_strided_slice %7 {offsets = [0, 0], sizes = [8, 256], strides = [1, 1]} : vector<8x512xf32> to vector<8x256xf32>
    %9 = vector.extract_strided_slice %7 {offsets = [0, 256], sizes = [8, 256], strides = [1, 1]} : vector<8x512xf32> to vector<8x256xf32>
    %c0_6 = arith.constant 0 : index
    %c0_7 = arith.constant 0 : index
    %10 = vector.load %arg4[%c0_6, %c0_7] : memref<256x256xf32, #tpu.memory_space<vmem>>, vector<256x256xf32>
    %cst_8 = arith.constant dense<0.000000e+00> : vector<8x256xf32>
    %11 = tpu.matmul %8, %10, %cst_8 {dimension_numbers = #tpu.dot_dimension_numbers<[1], [0], [0], [1], [0, 0, 1, 1], [], []>} : vector<8x256xf32>, vector<256x256xf32>, vector<8x256xf32> -> vector<8x256xf32>
    %c0_9 = arith.constant 0 : index
    %c0_10 = arith.constant 0 : index
    %12 = vector.load %arg5[%c0_9, %c0_10] : memref<1x256xf32, #tpu.memory_space<vmem>>, vector<1x256xf32>
    %13 = vector.broadcast %12 : vector<1x256xf32> to vector<8x256xf32>
    %14 = arith.addf %11, %13 : vector<8x256xf32>
    %cst_11 = arith.constant 0.000000e+00 : f32
    %15 = vector.broadcast %cst_11 : f32 to vector<8x256xf32>
    %16 = arith.maximumf %14, %15 : vector<8x256xf32>
    %c0_12 = arith.constant 0 : index
    %c0_13 = arith.constant 0 : index
    %17 = vector.load %arg6[%c0_12, %c0_13] : memref<256x256xf32, #tpu.memory_space<vmem>>, vector<256x256xf32>
    %cst_14 = arith.constant dense<0.000000e+00> : vector<8x256xf32>
    %18 = tpu.matmul %9, %17, %cst_14 {dimension_numbers = #tpu.dot_dimension_numbers<[1], [0], [0], [1], [0, 0, 1, 1], [], []>} : vector<8x256xf32>, vector<256x256xf32>, vector<8x256xf32> -> vector<8x256xf32>
    %c0_15 = arith.constant 0 : index
    %c0_16 = arith.constant 0 : index
    %19 = vector.load %arg7[%c0_15, %c0_16] : memref<1x256xf32, #tpu.memory_space<vmem>>, vector<1x256xf32>
    %20 = vector.broadcast %19 : vector<1x256xf32> to vector<8x256xf32>
    %21 = arith.addf %18, %20 : vector<8x256xf32>
    %cst_17 = arith.constant 0.000000e+00 : f32
    %22 = vector.broadcast %cst_17 : f32 to vector<8x256xf32>
    %23 = arith.maximumf %21, %22 : vector<8x256xf32>
    %c0_18 = arith.constant 0 : index
    %c0_19 = arith.constant 0 : index
    %24 = vector.load %arg8[%c0_18, %c0_19] : memref<1x256xf32, #tpu.memory_space<vmem>>, vector<1x256xf32>
    %25 = vector.broadcast %24 : vector<1x256xf32> to vector<8x256xf32>
    %26 = arith.mulf %16, %25 : vector<8x256xf32>
    %cst_20 = arith.constant dense<0.000000e+00> : vector<8xf32>
    %27 = vector.multi_reduction <add>, %26, %cst_20 [1] : vector<8x256xf32> to vector<8xf32>
    %28 = vector.shape_cast %27 : vector<8xf32> to vector<8x1xf32>
    %c0_21 = arith.constant 0 : index
    %c0_22 = arith.constant 0 : index
    %29 = vector.load %arg9[%c0_21, %c0_22] : memref<1x1xf32, #tpu.memory_space<vmem>>, vector<1x1xf32>
    %30 = vector.broadcast %29 : vector<1x1xf32> to vector<8x1xf32>
    %31 = arith.addf %28, %30 : vector<8x1xf32>
    %c0_23 = arith.constant 0 : index
    %c0_24 = arith.constant 0 : index
    %32 = vector.load %arg12[%c0_23, %c0_24] : memref<8x1xf32, #tpu.memory_space<vmem>>, vector<8x1xf32>
    tpu.vector_store %arg12[%c0_23, %c0_24], %31 {strides = array<i32>} : memref<8x1xf32, #tpu.memory_space<vmem>>, vector<8x1xf32>,
    %c0_25 = arith.constant 0 : index
    %c0_26 = arith.constant 0 : index
    %33 = vector.load %arg10[%c0_25, %c0_26] : memref<1x256xf32, #tpu.memory_space<vmem>>, vector<1x256xf32>
    %34 = vector.broadcast %33 : vector<1x256xf32> to vector<8x256xf32>
    %35 = arith.mulf %23, %34 : vector<8x256xf32>
    %cst_27 = arith.constant dense<0.000000e+00> : vector<8xf32>
    %36 = vector.multi_reduction <add>, %35, %cst_27 [1] : vector<8x256xf32> to vector<8xf32>
    %37 = vector.shape_cast %36 : vector<8xf32> to vector<8x1xf32>
    %c0_28 = arith.constant 0 : index
    %c0_29 = arith.constant 0 : index
    %38 = vector.load %arg11[%c0_28, %c0_29] : memref<1x1xf32, #tpu.memory_space<vmem>>, vector<1x1xf32>
    %39 = vector.broadcast %38 : vector<1x1xf32> to vector<8x1xf32>
    %40 = arith.addf %37, %39 : vector<8x1xf32>
    %c0_30 = arith.constant 0 : index
    %c0_31 = arith.constant 0 : index
    %41 = vector.load %arg13[%c0_30, %c0_31] : memref<8x1xf32, #tpu.memory_space<vmem>>, vector<8x1xf32>
    tpu.vector_store %arg13[%c0_30, %c0_31], %40 {strides = array<i32>} : memref<8x1xf32, #tpu.memory_space<vmem>>, vector<8x1xf32>,
    return
  }
  func.func @transform_0(%arg0: i32) -> (i32, i32) {
    %c0_i32 = arith.constant 0 : i32
    %c0_i32_0 = arith.constant 0 : i32
    return %arg0, %c0_i32 : i32, i32
  }
  func.func @transform_1(%arg0: i32) -> (i32, i32) {
    %c0_i32 = arith.constant 0 : i32
    %c0_i32_0 = arith.constant 0 : i32
    %c0_i32_1 = arith.constant 0 : i32
    return %c0_i32, %c0_i32_0 : i32, i32
  }
  func.func @transform_2(%arg0: i32) -> (i32, i32) {
    %c0_i32 = arith.constant 0 : i32
    %c0_i32_0 = arith.constant 0 : i32
    %c0_i32_1 = arith.constant 0 : i32
    return %c0_i32, %c0_i32_0 : i32, i32
  }
  func.func @transform_3(%arg0: i32) -> (i32, i32) {
    %c0_i32 = arith.constant 0 : i32
    %c0_i32_0 = arith.constant 0 : i32
    %c0_i32_1 = arith.constant 0 : i32
    return %c0_i32, %c0_i32_0 : i32, i32
  }
  func.func @transform_4(%arg0: i32) -> (i32, i32) {
    %c0_i32 = arith.constant 0 : i32
    %c0_i32_0 = arith.constant 0 : i32
    %c0_i32_1 = arith.constant 0 : i32
    return %c0_i32, %c0_i32_0 : i32, i32
  }
  func.func @transform_5(%arg0: i32) -> (i32, i32) {
    %c0_i32 = arith.constant 0 : i32
    %c0_i32_0 = arith.constant 0 : i32
    %c0_i32_1 = arith.constant 0 : i32
    return %c0_i32, %c0_i32_0 : i32, i32
  }
  func.func @transform_6(%arg0: i32) -> (i32, i32) {
    %c0_i32 = arith.constant 0 : i32
    %c0_i32_0 = arith.constant 0 : i32
    %c0_i32_1 = arith.constant 0 : i32
    return %c0_i32, %c0_i32_0 : i32, i32
  }
  func.func @transform_7(%arg0: i32) -> (i32, i32) {
    %c0_i32 = arith.constant 0 : i32
    %c0_i32_0 = arith.constant 0 : i32
    %c0_i32_1 = arith.constant 0 : i32
    return %c0_i32, %c0_i32_0 : i32, i32
  }
  func.func @transform_8(%arg0: i32) -> (i32, i32) {
    %c0_i32 = arith.constant 0 : i32
    %c0_i32_0 = arith.constant 0 : i32
    %c0_i32_1 = arith.constant 0 : i32
    return %c0_i32, %c0_i32_0 : i32, i32
  }
  func.func @transform_9(%arg0: i32) -> (i32, i32) {
    %c0_i32 = arith.constant 0 : i32
    %c0_i32_0 = arith.constant 0 : i32
    %c0_i32_1 = arith.constant 0 : i32
    return %c0_i32, %c0_i32_0 : i32, i32
  }
  func.func @transform_10(%arg0: i32) -> (i32, i32) {
    %c0_i32 = arith.constant 0 : i32
    %c0_i32_0 = arith.constant 0 : i32
    %c0_i32_1 = arith.constant 0 : i32
    return %c0_i32, %c0_i32_0 : i32, i32
  }
  func.func @transform_11(%arg0: i32) -> (i32, i32) {
    %c0_i32 = arith.constant 0 : i32
    %c0_i32_0 = arith.constant 0 : i32
    return %arg0, %c0_i32 : i32, i32
  }
  func.func @transform_12(%arg0: i32) -> (i32, i32) {
    %c0_i32 = arith.constant 0 : i32
    %c0_i32_0 = arith.constant 0 : i32
    return %arg0, %c0_i32 : i32, i32
  }
}

</mosaic_0001>

<llo_original>
// kernel: tpu_custom_call.1
$region0: #{tpu_custom_call.1}
  #allocation0 [shape = 'u32[]', space=smem, size = 0x4, offset = 0x4, fixed_abs, tag = 'smem constant byte address 0x4 - core index']
  #allocation1 [shape = 'u32[144,128]{1,0:T(1,128)}', space=vmem, size = 0x12000, scoped, tag = 'internal scratch']
  #allocation2 [shape = 'f32[1,1]{1,0:T(1,128)S(1)}', space=vmem, size = 0x200, scoped, tag = 'scoped memory for tpu_custom_call.1']
  #allocation3 [shape = 'f32[1,1]{1,0:T(1,128)S(1)}', space=vmem, size = 0x200, scoped, tag = 'scoped memory for tpu_custom_call.1']
  %s0 = inlined_call_operand.hbm [shape: f32[8,16], index: 0, kind: input, shape index: {}]
  %s1 = inlined_call_operand.hbm [shape: f32[16,512], index: 1, kind: input, shape index: {}]
  %s2 = inlined_call_operand.vmem [shape: f32[1,512], index: 2, kind: input, shape index: {}]
  %s3 = inlined_call_operand.hbm [shape: f32[256,256], index: 3, kind: input, shape index: {}]
  %s4 = inlined_call_operand.vmem [shape: f32[1,256], index: 4, kind: input, shape index: {}]
  %s5 = inlined_call_operand.hbm [shape: f32[256,256], index: 5, kind: input, shape index: {}]
  %s6 = inlined_call_operand.vmem [shape: f32[1,256], index: 6, kind: input, shape index: {}]
  %s7 = inlined_call_operand.vmem [shape: f32[1,256], index: 7, kind: input, shape index: {}]
  %s8 = inlined_call_operand.<no memory space> [shape: f32[1,1], index: 8, kind: input, shape index: {}]
  %s9 = inlined_call_operand.vmem [shape: f32[1,256], index: 9, kind: input, shape index: {}]
  %s10 = inlined_call_operand.<no memory space> [shape: f32[1,1], index: 10, kind: input, shape index: {}]
  %s11 = inlined_call_operand.vmem [shape: f32[8,1], index: 11, kind: output, shape index: {0}]
  %s12 = inlined_call_operand.vmem [shape: f32[8,1], index: 12, kind: output, shape index: {1}]
  %13 = xla_tuple %s11, %s12
  %s14 = sld [smem:[#allocation0]]
  $region78: #{tpu_custom_call.1} parent=0
    _
  %s16 = ssub.s32 1, %s14
  %s17 = scalar_select 0, %s16, %s14
  %v18 = vstv %s8
  %19 = vst [vmem:[#allocation2] sm:$0x1] %v18
  %v20 = vstv %s10
  %21 = vst [vmem:[#allocation3] sm:$0x1] %v20
  $region1: #{tpu_custom_call.1} parent=0
    #allocation4 [shape = 'u8[4096]{0}', space=vmem, size = 0x1000, scoped, tag = 'input window, operand 0, single buffered']
    #allocation5 [shape = 's32[1]{0}', space=sflag, size = 0x4, scoped, tag = 'scoped memory for tpu_custom_call.1']
    #allocation6 [shape = 'u8[32768]{0}', space=vmem, size = 0x8000, scoped, tag = 'input window, operand 1, single buffered']
    #allocation7 [shape = 's32[1]{0}', space=sflag, size = 0x4, scoped, tag = 'scoped memory for tpu_custom_call.1']
    #allocation8 [shape = 'u8[262144]{0}', space=vmem, size = 0x40000, scoped, tag = 'input window, operand 3, single buffered']
    #allocation9 [shape = 'u8[262144]{0}', space=vmem, size = 0x40000, scoped, tag = 'input window, operand 5, single buffered']
    #allocation10 [shape = 's32[1]{0}', space=sflag, size = 0x4, scoped, tag = 'scoped memory for tpu_custom_call.1']
    %22 = vsyncpa [#allocation5], 0
    %23 = vsyncpa [#allocation7], 0
    %24 = vsyncpa [#allocation10], 0
    // Predicated region
    $region2: #{tpu_custom_call.1} parent=1 // pred_check
      _
    $region3: #{tpu_custom_call.1} parent=1 // pred_check_branch
      %26 = sbr.rel (0) target = $region5
    $region4: #{tpu_custom_call.1} parent=1 // pred_region
      %s28 = ssub.s32 128, 128
      %29 = vsyncadd [#allocation5], %s28
      %s31 = sshll.u32 [#allocation4], 4
      %s32 = int_to_ptr.vmem [resolvable:$true] %s31
      %34 = dma.hbm_to_vmem [thread:$0]  %s0, 128, %s32, [#allocation5]
    $region5: #{tpu_custom_call.1} parent=1 // pred_fallthru
      _
    // Predicated region
    $region6: #{tpu_custom_call.1} parent=1 // pred_check
      _
    $region7: #{tpu_custom_call.1} parent=1 // pred_check_branch
      %36 = sbr.rel (0) target = $region9
    $region8: #{tpu_custom_call.1} parent=1 // pred_region
      %s38 = ssub.s32 1024, 1024
      %39 = vsyncadd [#allocation7], %s38
      %s40 = sshll.u32 [#allocation6], 4
      %s41 = int_to_ptr.vmem [resolvable:$true] %s40
      %46 = dma.hbm_to_vmem [thread:$0]  %s1, 1024, %s41, [#allocation7], 512, 512, 32
    $region9: #{tpu_custom_call.1} parent=1 // pred_fallthru
      _
    // Predicated region
    $region10: #{tpu_custom_call.1} parent=1 // pred_check
      _
    $region11: #{tpu_custom_call.1} parent=1 // pred_check_branch
      %48 = sbr.rel (0) target = $region13
    $region12: #{tpu_custom_call.1} parent=1 // pred_region
      _
    $region13: #{tpu_custom_call.1} parent=1 // pred_fallthru
      _
    // Predicated region
    $region14: #{tpu_custom_call.1} parent=1 // pred_check
      _
    $region15: #{tpu_custom_call.1} parent=1 // pred_check_branch
      %50 = sbr.rel (0) target = $region17
    $region16: #{tpu_custom_call.1} parent=1 // pred_region
      %s52 = ssub.s32 8192, 8192
      %53 = vsyncadd [#allocation7], %s52
      %s54 = sshll.u32 [#allocation8], 4
      %s55 = int_to_ptr.vmem [resolvable:$true] %s54
      %60 = dma.hbm_to_vmem [thread:$0]  %s3, 8192, %s55, [#allocation7], 256, 256, 16
    $region17: #{tpu_custom_call.1} parent=1 // pred_fallthru
      _
    // Predicated region
    $region18: #{tpu_custom_call.1} parent=1 // pred_check
      _
    $region19: #{tpu_custom_call.1} parent=1 // pred_check_branch
      %62 = sbr.rel (0) target = $region21
    $region20: #{tpu_custom_call.1} parent=1 // pred_region
      _
    $region21: #{tpu_custom_call.1} parent=1 // pred_fallthru
      _
    // Predicated region
    $region22: #{tpu_custom_call.1} parent=1 // pred_check
      _
    $region23: #{tpu_custom_call.1} parent=1 // pred_check_branch
      %64 = sbr.rel (0) target = $region25
    $region24: #{tpu_custom_call.1} parent=1 // pred_region
      %s66 = ssub.s32 8192, 8192
      %67 = vsyncadd [#allocation10], %s66
      %s68 = sshll.u32 [#allocation9], 4
      %s69 = int_to_ptr.vmem [resolvable:$true] %s68
      %74 = dma.hbm_to_vmem [thread:$0]  %s5, 8192, %s69, [#allocation10], 256, 256, 16
    $region25: #{tpu_custom_call.1} parent=1 // pred_fallthru
      _
    // Predicated region
    $region26: #{tpu_custom_call.1} parent=1 // pred_check
      _
    $region27: #{tpu_custom_call.1} parent=1 // pred_check_branch
      %76 = sbr.rel (0) target = $region29
    $region28: #{tpu_custom_call.1} parent=1 // pred_region
      _
    $region29: #{tpu_custom_call.1} parent=1 // pred_fallthru
      _
    // Predicated region
    $region30: #{tpu_custom_call.1} parent=1 // pred_check
      _
    $region31: #{tpu_custom_call.1} parent=1 // pred_check_branch
      %78 = sbr.rel (0) target = $region33
    $region32: #{tpu_custom_call.1} parent=1 // pred_region
      _
    $region33: #{tpu_custom_call.1} parent=1 // pred_fallthru
      _
    // Predicated region
    $region34: #{tpu_custom_call.1} parent=1 // pred_check
      _
    $region35: #{tpu_custom_call.1} parent=1 // pred_check_branch
      %80 = sbr.rel (0) target = $region37
    $region36: #{tpu_custom_call.1} parent=1 // pred_region
      _
    $region37: #{tpu_custom_call.1} parent=1 // pred_fallthru
      _
    // Predicated region
    $region38: #{tpu_custom_call.1} parent=1 // pred_check
      _
    $region39: #{tpu_custom_call.1} parent=1 // pred_check_branch
      %82 = sbr.rel (0) target = $region41
    $region40: #{tpu_custom_call.1} parent=1 // pred_region
      _
    $region41: #{tpu_custom_call.1} parent=1 // pred_fallthru
      _
    // Predicated region
    $region42: #{tpu_custom_call.1} parent=1 // pred_check
      _
    $region43: #{tpu_custom_call.1} parent=1 // pred_check_branch
      %84 = sbr.rel (0) target = $region45
    $region44: #{tpu_custom_call.1} parent=1 // pred_region
      _
    $region45: #{tpu_custom_call.1} parent=1 // pred_fallthru
      _
    // Predicated region
    $region46: #{tpu_custom_call.1} parent=1 // pred_check
      _
    $region47: #{tpu_custom_call.1} parent=1 // pred_check_branch
      %86 = sbr.rel (0) target = $region49
    $region48: #{tpu_custom_call.1} parent=1 // pred_region
      %87 = dma.done [#allocation5], 128
    $region49: #{tpu_custom_call.1} parent=1 // pred_fallthru
      _
    // Predicated region
    $region50: #{tpu_custom_call.1} parent=1 // pred_check
      _
    $region51: #{tpu_custom_call.1} parent=1 // pred_check_branch
      %89 = sbr.rel (0) target = $region53
    $region52: #{tpu_custom_call.1} parent=1 // pred_region
      %90 = dma.done [#allocation7], 1024
    $region53: #{tpu_custom_call.1} parent=1 // pred_fallthru
      _
    // Predicated region
    $region54: #{tpu_custom_call.1} parent=1 // pred_check
      _
    $region55: #{tpu_custom_call.1} parent=1 // pred_check_branch
      %92 = sbr.rel (0) target = $region57
    $region56: #{tpu_custom_call.1} parent=1 // pred_region
      %93 = dma.done [#allocation7], 8192
    $region57: #{tpu_custom_call.1} parent=1 // pred_fallthru
      _
    // Predicated region
    $region58: #{tpu_custom_call.1} parent=1 // pred_check
      _
    $region59: #{tpu_custom_call.1} parent=1 // pred_check_branch
      %95 = sbr.rel (0) target = $region61
    $region60: #{tpu_custom_call.1} parent=1 // pred_region
      %96 = dma.done [#allocation10], 8192
    $region61: #{tpu_custom_call.1} parent=1 // pred_fallthru
      _
    %v97 = vld [vmem:[#allocation4] sm:$0xff]
    %v98 = vld [vmem:[#allocation6] sm:$0xff]
    %v99 = vld [vmem:[#allocation6 + $0x8] sm:$0xff]
    %v100 = vld [vmem:[#allocation6 + $0x10] sm:$0xff]
    %v101 = vld [vmem:[#allocation6 + $0x18] sm:$0xff]
    %v102 = vld [vmem:[#allocation6 + $0x20] sm:$0xff]
    %v103 = vld [vmem:[#allocation6 + $0x28] sm:$0xff]
    %v104 = vld [vmem:[#allocation6 + $0x30] sm:$0xff]
    %v105 = vld [vmem:[#allocation6 + $0x38] sm:$0xff]
    %v106 = vld [vmem:[%s2] sm:$0xf]
    %v108 = vlaneseq
    %v109 = vshrl.u32 %v108, 7
    %v110 = vsub.s32 0, %v109
    %v111 = vrot.slane %v106, %v110
    %v112 = vlaneseq
    %v113 = vshrl.u32 %v112, 7
    %v114 = vsub.s32 1, %v113
    %v115 = vrot.slane %v106, %v114
    %v116 = vlaneseq
    %v117 = vshrl.u32 %v116, 7
    %v118 = vsub.s32 2, %v117
    %v119 = vrot.slane %v106, %v118
    %v120 = vlaneseq
    %v121 = vshrl.u32 %v120, 7
    %v122 = vsub.s32 3, %v121
    %v123 = vrot.slane %v106, %v122
    %vm128 = vcmask 130048
    %v130 = vsel %vm128, %v97, 0
    %132 = vmatprep.subr.mxu0 %v99
    %133 = vmatpush1.msra.mxu0 %v98
    %134 = vmatprep.subr.mxu0 %v103
    %135 = vmatpush1.msra.mxu0 %v102
    %136 = vmatprep.subr.mxu0 0.0
    %137 = vmatpush1.msra.mxu0 0.0
    %138 = vmatprep.subr.mxu0 0.0
    %139 = vmatpush1.msra.mxu0 0.0
    %140 = vmatprep.subr.mxu0 0.0
    %141 = vmatpush1.msra.mxu0 0.0
    %142 = vmatprep.subr.mxu0 0.0
    %143 = vmatpush1.msra.mxu0 0.0
    %144 = vmatprep.subr.mxu0 0.0
    %145 = vmatpush1.msra.mxu0 0.0
    %146 = vmatprep.subr.mxu0 0.0
    %147 = vmatpush1.msra.mxu0 0.0
    %148 = vmatprep.subr.mxu0 0.0
    %149 = vmatpush1.msra.mxu0 0.0
    %150 = vmatprep.subr.mxu0 0.0
    %151 = vmatpush1.msra.mxu0 0.0
    %152 = vmatprep.subr.mxu0 0.0
    %153 = vmatpush1.msra.mxu0 0.0
    %154 = vmatprep.subr.mxu0 0.0
    %155 = vmatpush1.msra.mxu0 0.0
    %156 = vmatprep.subr.mxu0 0.0
    %157 = vmatpush1.msra.mxu0 0.0
    %158 = vmatprep.subr.mxu0 0.0
    %159 = vmatpush1.msra.mxu0 0.0
    %160 = vmatprep.subr.mxu0 0.0
    %161 = vmatpush1.msra.mxu0 0.0
    %162 = vmatprep.subr.mxu0 0.0
    %163 = vmatpush1.msra.mxu0 0.0
    %164 = vmatprep.subr.mxu0 0.0
    %165 = vmatpush1.msra.mxu0 0.0
    %166 = vmatprep.subr.mxu0 0.0
    %167 = vmatpush1.msra.mxu0 0.0
    %168 = vmatprep.subr.mxu0 0.0
    %169 = vmatpush1.msra.mxu0 0.0
    %170 = vmatprep.subr.mxu0 0.0
    %171 = vmatpush1.msra.mxu0 0.0
    %172 = vmatprep.subr.mxu0 0.0
    %173 = vmatpush1.msra.mxu0 0.0
    %174 = vmatprep.subr.mxu0 0.0
    %175 = vmatpush1.msra.mxu0 0.0
    %176 = vmatprep.subr.mxu0 0.0
    %177 = vmatpush1.msra.mxu0 0.0
    %178 = vmatprep.subr.mxu0 0.0
    %179 = vmatpush1.msra.mxu0 0.0
    %180 = vmatprep.subr.mxu0 0.0
    %181 = vmatpush1.msra.mxu0 0.0
    %182 = vmatprep.subr.mxu0 0.0
    %183 = vmatpush1.msra.mxu0 0.0
    %184 = vmatprep.subr.mxu0 0.0
    %185 = vmatpush1.msra.mxu0 0.0
    %186 = vmatprep.subr.mxu0 0.0
    %187 = vmatpush1.msra.mxu0 0.0
    %188 = vmatprep.subr.mxu0 0.0
    %189 = vmatpush1.msra.mxu0 0.0
    %190 = vmatprep.subr.mxu0 0.0
    %191 = vmatpush1.msra.mxu0 0.0
    %192 = vmatprep.subr.mxu0 0.0
    %193 = vmatpush1.msra.mxu0 0.0
    %194 = vmatprep.subr.mxu0 0.0
    %195 = vmatpush1.msra.mxu0 0.0
    %196 = vmatprep.mubr.f32.mxu0 0.0
    %197 = vmatmul.mubr.f32.gmra.mrb[0].mxu0 %v130
    %v198 = vpop.f32.mrb[0].mxu0
    %v199 = vadd.f32 %v111, %v198
    %v200 = vpop.f32.mrb[0].mxu0
    %v201 = vadd.f32 %v115, %v200
    %202 = vdwg.mxu0
    %203 = vmatprep.subr.mxu0 %v101
    %204 = vmatpush1.msra.mxu0 %v100
    %205 = vmatprep.subr.mxu0 %v105
    %206 = vmatpush1.msra.mxu0 %v104
    %207 = vmatprep.subr.mxu0 0.0
    %208 = vmatpush1.msra.mxu0 0.0
    %209 = vmatprep.subr.mxu0 0.0
    %210 = vmatpush1.msra.mxu0 0.0
    %211 = vmatprep.subr.mxu0 0.0
    %212 = vmatpush1.msra.mxu0 0.0
    %213 = vmatprep.subr.mxu0 0.0
    %214 = vmatpush1.msra.mxu0 0.0
    %215 = vmatprep.subr.mxu0 0.0
    %216 = vmatpush1.msra.mxu0 0.0
    %217 = vmatprep.subr.mxu0 0.0
    %218 = vmatpush1.msra.mxu0 0.0
    %219 = vmatprep.subr.mxu0 0.0
    %220 = vmatpush1.msra.mxu0 0.0
    %221 = vmatprep.subr.mxu0 0.0
    %222 = vmatpush1.msra.mxu0 0.0
    %223 = vmatprep.subr.mxu0 0.0
    %224 = vmatpush1.msra.mxu0 0.0
    %225 = vmatprep.subr.mxu0 0.0
    %226 = vmatpush1.msra.mxu0 0.0
    %227 = vmatprep.subr.mxu0 0.0
    %228 = vmatpush1.msra.mxu0 0.0
    %229 = vmatprep.subr.mxu0 0.0
    %230 = vmatpush1.msra.mxu0 0.0
    %231 = vmatprep.subr.mxu0 0.0
    %232 = vmatpush1.msra.mxu0 0.0
    %233 = vmatprep.subr.mxu0 0.0
    %234 = vmatpush1.msra.mxu0 0.0
    %235 = vmatprep.subr.mxu0 0.0
    %236 = vmatpush1.msra.mxu0 0.0
    %237 = vmatprep.subr.mxu0 0.0
    %238 = vmatpush1.msra.mxu0 0.0
    %239 = vmatprep.subr.mxu0 0.0
    %240 = vmatpush1.msra.mxu0 0.0
    %241 = vmatprep.subr.mxu0 0.0
    %242 = vmatpush1.msra.mxu0 0.0
    %243 = vmatprep.subr.mxu0 0.0
    %244 = vmatpush1.msra.mxu0 0.0
    %245 = vmatprep.subr.mxu0 0.0
    %246 = vmatpush1.msra.mxu0 0.0
    %247 = vmatprep.subr.mxu0 0.0
    %248 = vmatpush1.msra.mxu0 0.0
    %249 = vmatprep.subr.mxu0 0.0
    %250 = vmatpush1.msra.mxu0 0.0
    %251 = vmatprep.subr.mxu0 0.0
    %252 = vmatpush1.msra.mxu0 0.0
    %253 = vmatprep.subr.mxu0 0.0
    %254 = vmatpush1.msra.mxu0 0.0
    %255 = vmatprep.subr.mxu0 0.0
    %256 = vmatpush1.msra.mxu0 0.0
    %257 = vmatprep.subr.mxu0 0.0
    %258 = vmatpush1.msra.mxu0 0.0
    %259 = vmatprep.subr.mxu0 0.0
    %260 = vmatpush1.msra.mxu0 0.0
    %261 = vmatprep.subr.mxu0 0.0
    %262 = vmatpush1.msra.mxu0 0.0
    %263 = vmatprep.subr.mxu0 0.0
    %264 = vmatpush1.msra.mxu0 0.0
    %265 = vmatprep.subr.mxu0 0.0
    %266 = vmatpush1.msra.mxu0 0.0
    %267 = vmatprep.mubr.f32.mxu0 0.0
    %268 = vmatmul.mubr.f32.gmra.mrb[0].mxu0 %v130
    %v269 = vpop.f32.mrb[0].mxu0
    %v270 = vadd.f32 %v119, %v269
    %v271 = vpop.f32.mrb[0].mxu0
    %v272 = vadd.f32 %v123, %v271
    %273 = vdwg.mxu0
    %v274 = vmax.f32 %v199, 0.0
    %v275 = vmax.f32 %v201, 0.0
    %v276 = vmax.f32 %v270, 0.0
    %v277 = vmax.f32 %v272, 0.0
    %v278 = vld [vmem:[#allocation8] sm:$0xff]
    %v279 = vld [vmem:[#allocation8 + $0x8] sm:$0xff]
    %v280 = vld [vmem:[#allocation8 + $0x10] sm:$0xff]
    %v281 = vld [vmem:[#allocation8 + $0x18] sm:$0xff]
    %v282 = vld [vmem:[#allocation8 + $0x20] sm:$0xff]
    %v283 = vld [vmem:[#allocation8 + $0x28] sm:$0xff]
    %v284 = vld [vmem:[#allocation8 + $0x30] sm:$0xff]
    %v285 = vld [vmem:[#allocation8 + $0x38] sm:$0xff]
    %v286 = vld [vmem:[#allocation8 + $0x40] sm:$0xff]
    %v287 = vld [vmem:[#allocation8 + $0x48] sm:$0xff]
    %v288 = vld [vmem:[#allocation8 + $0x50] sm:$0xff]
    %v289 = vld [vmem:[#allocation8 + $0x58] sm:$0xff]
    %v290 = vld [vmem:[#allocation8 + $0x60] sm:$0xff]
    %v291 = vld [vmem:[#allocation8 + $0x68] sm:$0xff]
    %v292 = vld [vmem:[#allocation8 + $0x70] sm:$0xff]
    %v293 = vld [vmem:[#allocation8 + $0x78] sm:$0xff]
    %v294 = vld [vmem:[#allocation8 + $0x80] sm:$0xff]
    %v295 = vld [vmem:[#allocation8 + $0x88] sm:$0xff]
    %v296 = vld [vmem:[#allocation8 + $0x90] sm:$0xff]
    %v297 = vld [vmem:[#allocation8 + $0x98] sm:$0xff]
    %v298 = vld [vmem:[#allocation8 + $0xa0] sm:$0xff]
    %v299 = vld [vmem:[#allocation8 + $0xa8] sm:$0xff]
    %v300 = vld [vmem:[#allocation8 + $0xb0] sm:$0xff]
    %v301 = vld [vmem:[#allocation8 + $0xb8] sm:$0xff]
    %v302 = vld [vmem:[#allocation8 + $0xc0] sm:$0xff]
    %v303 = vld [vmem:[#allocation8 + $0xc8] sm:$0xff]
    %v304 = vld [vmem:[#allocation8 + $0xd0] sm:$0xff]
    %v305 = vld [vmem:[#allocation8 + $0xd8] sm:$0xff]
    %v306 = vld [vmem:[#allocation8 + $0xe0] sm:$0xff]
    %v307 = vld [vmem:[#allocation8 + $0xe8] sm:$0xff]
    %v308 = vld [vmem:[#allocation8 + $0xf0] sm:$0xff]
    %v309 = vld [vmem:[#allocation8 + $0xf8] sm:$0xff]
    %v310 = vld [vmem:[#allocation8 + $0x100] sm:$0xff]
    %v311 = vld [vmem:[#allocation8 + $0x108] sm:$0xff]
    %v312 = vld [vmem:[#allocation8 + $0x110] sm:$0xff]
    %v313 = vld [vmem:[#allocation8 + $0x118] sm:$0xff]
    %v314 = vld [vmem:[#allocation8 + $0x120] sm:$0xff]
    %v315 = vld [vmem:[#allocation8 + $0x128] sm:$0xff]
    %v316 = vld [vmem:[#allocation8 + $0x130] sm:$0xff]
    %v317 = vld [vmem:[#allocation8 + $0x138] sm:$0xff]
    %v318 = vld [vmem:[#allocation8 + $0x140] sm:$0xff]
    %v319 = vld [vmem:[#allocation8 + $0x148] sm:$0xff]
    %v320 = vld [vmem:[#allocation8 + $0x150] sm:$0xff]
    %v321 = vld [vmem:[#allocation8 + $0x158] sm:$0xff]
    %v322 = vld [vmem:[#allocation8 + $0x160] sm:$0xff]
    %v323 = vld [vmem:[#allocation8 + $0x168] sm:$0xff]
    %v324 = vld [vmem:[#allocation8 + $0x170] sm:$0xff]
    %v325 = vld [vmem:[#allocation8 + $0x178] sm:$0xff]
    %v326 = vld [vmem:[#allocation8 + $0x180] sm:$0xff]
    %v327 = vld [vmem:[#allocation8 + $0x188] sm:$0xff]
    %v328 = vld [vmem:[#allocation8 + $0x190] sm:$0xff]
    %v329 = vld [vmem:[#allocation8 + $0x198] sm:$0xff]
    %v330 = vld [vmem:[#allocation8 + $0x1a0] sm:$0xff]
    %v331 = vld [vmem:[#allocation8 + $0x1a8] sm:$0xff]
    %v332 = vld [vmem:[#allocation8 + $0x1b0] sm:$0xff]
    %v333 = vld [vmem:[#allocation8 + $0x1b8] sm:$0xff]
    %v334 = vld [vmem:[#allocation8 + $0x1c0] sm:$0xff]
    %v335 = vld [vmem:[#allocation8 + $0x1c8] sm:$0xff]
    %v336 = vld [vmem:[#allocation8 + $0x1d0] sm:$0xff]
    %v337 = vld [vmem:[#allocation8 + $0x1d8] sm:$0xff]
    %v338 = vld [vmem:[#allocation8 + $0x1e0] sm:$0xff]
    %v339 = vld [vmem:[#allocation8 + $0x1e8] sm:$0xff]
    %v340 = vld [vmem:[#allocation8 + $0x1f0] sm:$0xff]
    %v341 = vld [vmem:[#allocation8 + $0x1f8] sm:$0xff]
    %v342 = vld [vmem:[%s4] sm:$0x3]
    %v344 = vlaneseq
    %v345 = vshrl.u32 %v344, 7
    %v346 = vsub.s32 0, %v345
    %v347 = vrot.slane %v342, %v346
    %v348 = vlaneseq
    %v349 = vshrl.u32 %v348, 7
    %v350 = vsub.s32 1, %v349
    %v351 = vrot.slane %v342, %v350
    %354 = vmatprep.subr.mxu0 %v279
    %355 = vmatpush1.msra.mxu0 %v278
    %356 = vmatprep.subr.mxu0 %v281
    %357 = vmatpush1.msra.mxu0 %v280
    %358 = vmatprep.subr.mxu0 %v283
    %359 = vmatpush1.msra.mxu0 %v282
    %360 = vmatprep.subr.mxu0 %v285
    %361 = vmatpush1.msra.mxu0 %v284
    %362 = vmatprep.subr.mxu0 %v287
    %363 = vmatpush1.msra.mxu0 %v286
    %364 = vmatprep.subr.mxu0 %v289
    %365 = vmatpush1.msra.mxu0 %v288
    %366 = vmatprep.subr.mxu0 %v291
    %367 = vmatpush1.msra.mxu0 %v290
    %368 = vmatprep.subr.mxu0 %v293
    %369 = vmatpush1.msra.mxu0 %v292
    %370 = vmatprep.subr.mxu0 %v295
    %371 = vmatpush1.msra.mxu0 %v294
    %372 = vmatprep.subr.mxu0 %v297
    %373 = vmatpush1.msra.mxu0 %v296
    %374 = vmatprep.subr.mxu0 %v299
    %375 = vmatpush1.msra.mxu0 %v298
    %376 = vmatprep.subr.mxu0 %v301
    %377 = vmatpush1.msra.mxu0 %v300
    %378 = vmatprep.subr.mxu0 %v303
    %379 = vmatpush1.msra.mxu0 %v302
    %380 = vmatprep.subr.mxu0 %v305
    %381 = vmatpush1.msra.mxu0 %v304
    %382 = vmatprep.subr.mxu0 %v307
    %383 = vmatpush1.msra.mxu0 %v306
    %384 = vmatprep.subr.mxu0 %v309
    %385 = vmatpush1.msra.mxu0 %v308
    %386 = vmatprep.subr.mxu0 %v311
    %387 = vmatpush1.msra.mxu0 %v310
    %388 = vmatprep.subr.mxu0 %v313
    %389 = vmatpush1.msra.mxu0 %v312
    %390 = vmatprep.subr.mxu0 %v315
    %391 = vmatpush1.msra.mxu0 %v314
    %392 = vmatprep.subr.mxu0 %v317
    %393 = vmatpush1.msra.mxu0 %v316
    %394 = vmatprep.subr.mxu0 %v319
    %395 = vmatpush1.msra.mxu0 %v318
    %396 = vmatprep.subr.mxu0 %v321
    %397 = vmatpush1.msra.mxu0 %v320
    %398 = vmatprep.subr.mxu0 %v323
    %399 = vmatpush1.msra.mxu0 %v322
    %400 = vmatprep.subr.mxu0 %v325
    %401 = vmatpush1.msra.mxu0 %v324
    %402 = vmatprep.subr.mxu0 %v327
    %403 = vmatpush1.msra.mxu0 %v326
    %404 = vmatprep.subr.mxu0 %v329
    %405 = vmatpush1.msra.mxu0 %v328
    %406 = vmatprep.subr.mxu0 %v331
    %407 = vmatpush1.msra.mxu0 %v330
    %408 = vmatprep.subr.mxu0 %v333
    %409 = vmatpush1.msra.mxu0 %v332
    %410 = vmatprep.subr.mxu0 %v335
    %411 = vmatpush1.msra.mxu0 %v334
    %412 = vmatprep.subr.mxu0 %v337
    %413 = vmatpush1.msra.mxu0 %v336
    %414 = vmatprep.subr.mxu0 %v339
    %415 = vmatpush1.msra.mxu0 %v338
    %416 = vmatprep.subr.mxu0 %v341
    %417 = vmatpush1.msra.mxu0 %v340
    %418 = vmatprep.mubr.f32.mxu0 %v275
    %419 = vmatmul.mubr.f32.gmra.mrb[0].mxu0 %v274
    %v420 = vpop.f32.mrb[0].mxu0
    %v421 = vadd.f32 %v347, %v420
    %v422 = vpop.f32.mrb[0].mxu0
    %v423 = vadd.f32 %v351, %v422
    %424 = vdwg.mxu0
    %v425 = vmax.f32 %v421, 0.0
    %v426 = vmax.f32 %v423, 0.0
    %v427 = vld [vmem:[#allocation9] sm:$0xff]
    %v428 = vld [vmem:[#allocation9 + $0x8] sm:$0xff]
    %v429 = vld [vmem:[#allocation9 + $0x10] sm:$0xff]
    %v430 = vld [vmem:[#allocation9 + $0x18] sm:$0xff]
    %v431 = vld [vmem:[#allocation9 + $0x20] sm:$0xff]
    %v432 = vld [vmem:[#allocation9 + $0x28] sm:$0xff]
    %v433 = vld [vmem:[#allocation9 + $0x30] sm:$0xff]
    %v434 = vld [vmem:[#allocation9 + $0x38] sm:$0xff]
    %v435 = vld [vmem:[#allocation9 + $0x40] sm:$0xff]
    %v436 = vld [vmem:[#allocation9 + $0x48] sm:$0xff]
    %v437 = vld [vmem:[#allocation9 + $0x50] sm:$0xff]
    %v438 = vld [vmem:[#allocation9 + $0x58] sm:$0xff]
    %v439 = vld [vmem:[#allocation9 + $0x60] sm:$0xff]
    %v440 = vld [vmem:[#allocation9 + $0x68] sm:$0xff]
    %v441 = vld [vmem:[#allocation9 + $0x70] sm:$0xff]
    %v442 = vld [vmem:[#allocation9 + $0x78] sm:$0xff]
    %v443 = vld [vmem:[#allocation9 + $0x80] sm:$0xff]
    %v444 = vld [vmem:[#allocation9 + $0x88] sm:$0xff]
    %v445 = vld [vmem:[#allocation9 + $0x90] sm:$0xff]
    %v446 = vld [vmem:[#allocation9 + $0x98] sm:$0xff]
    %v447 = vld [vmem:[#allocation9 + $0xa0] sm:$0xff]
    %v448 = vld [vmem:[#allocation9 + $0xa8] sm:$0xff]
    %v449 = vld [vmem:[#allocation9 + $0xb0] sm:$0xff]
    %v450 = vld [vmem:[#allocation9 + $0xb8] sm:$0xff]
    %v451 = vld [vmem:[#allocation9 + $0xc0] sm:$0xff]
    %v452 = vld [vmem:[#allocation9 + $0xc8] sm:$0xff]
    %v453 = vld [vmem:[#allocation9 + $0xd0] sm:$0xff]
    %v454 = vld [vmem:[#allocation9 + $0xd8] sm:$0xff]
    %v455 = vld [vmem:[#allocation9 + $0xe0] sm:$0xff]
    %v456 = vld [vmem:[#allocation9 + $0xe8] sm:$0xff]
    %v457 = vld [vmem:[#allocation9 + $0xf0] sm:$0xff]
    %v458 = vld [vmem:[#allocation9 + $0xf8] sm:$0xff]
    %v459 = vld [vmem:[#allocation9 + $0x100] sm:$0xff]
    %v460 = vld [vmem:[#allocation9 + $0x108] sm:$0xff]
    %v461 = vld [vmem:[#allocation9 + $0x110] sm:$0xff]
    %v462 = vld [vmem:[#allocation9 + $0x118] sm:$0xff]
    %v463 = vld [vmem:[#allocation9 + $0x120] sm:$0xff]
    %v464 = vld [vmem:[#allocation9 + $0x128] sm:$0xff]
    %v465 = vld [vmem:[#allocation9 + $0x130] sm:$0xff]
    %v466 = vld [vmem:[#allocation9 + $0x138] sm:$0xff]
    %v467 = vld [vmem:[#allocation9 + $0x140] sm:$0xff]
    %v468 = vld [vmem:[#allocation9 + $0x148] sm:$0xff]
    %v469 = vld [vmem:[#allocation9 + $0x150] sm:$0xff]
    %v470 = vld [vmem:[#allocation9 + $0x158] sm:$0xff]
    %v471 = vld [vmem:[#allocation9 + $0x160] sm:$0xff]
    %v472 = vld [vmem:[#allocation9 + $0x168] sm:$0xff]
    %v473 = vld [vmem:[#allocation9 + $0x170] sm:$0xff]
    %v474 = vld [vmem:[#allocation9 + $0x178] sm:$0xff]
    %v475 = vld [vmem:[#allocation9 + $0x180] sm:$0xff]
    %v476 = vld [vmem:[#allocation9 + $0x188] sm:$0xff]
    %v477 = vld [vmem:[#allocation9 + $0x190] sm:$0xff]
    %v478 = vld [vmem:[#allocation9 + $0x198] sm:$0xff]
    %v479 = vld [vmem:[#allocation9 + $0x1a0] sm:$0xff]
    %v480 = vld [vmem:[#allocation9 + $0x1a8] sm:$0xff]
    %v481 = vld [vmem:[#allocation9 + $0x1b0] sm:$0xff]
    %v482 = vld [vmem:[#allocation9 + $0x1b8] sm:$0xff]
    %v483 = vld [vmem:[#allocation9 + $0x1c0] sm:$0xff]
    %v484 = vld [vmem:[#allocation9 + $0x1c8] sm:$0xff]
    %v485 = vld [vmem:[#allocation9 + $0x1d0] sm:$0xff]
    %v486 = vld [vmem:[#allocation9 + $0x1d8] sm:$0xff]
    %v487 = vld [vmem:[#allocation9 + $0x1e0] sm:$0xff]
    %v488 = vld [vmem:[#allocation9 + $0x1e8] sm:$0xff]
    %v489 = vld [vmem:[#allocation9 + $0x1f0] sm:$0xff]
    %v490 = vld [vmem:[#allocation9 + $0x1f8] sm:$0xff]
    %v491 = vld [vmem:[%s6] sm:$0x3]
    %v493 = vlaneseq
    %v494 = vshrl.u32 %v493, 7
    %v495 = vsub.s32 0, %v494
    %v496 = vrot.slane %v491, %v495
    %v497 = vlaneseq
    %v498 = vshrl.u32 %v497, 7
    %v499 = vsub.s32 1, %v498
    %v500 = vrot.slane %v491, %v499
    %503 = vmatprep.subr.mxu0 %v428
    %504 = vmatpush1.msra.mxu0 %v427
    %505 = vmatprep.subr.mxu0 %v430
    %506 = vmatpush1.msra.mxu0 %v429
    %507 = vmatprep.subr.mxu0 %v432
    %508 = vmatpush1.msra.mxu0 %v431
    %509 = vmatprep.subr.mxu0 %v434
    %510 = vmatpush1.msra.mxu0 %v433
    %511 = vmatprep.subr.mxu0 %v436
    %512 = vmatpush1.msra.mxu0 %v435
    %513 = vmatprep.subr.mxu0 %v438
    %514 = vmatpush1.msra.mxu0 %v437
    %515 = vmatprep.subr.mxu0 %v440
    %516 = vmatpush1.msra.mxu0 %v439
    %517 = vmatprep.subr.mxu0 %v442
    %518 = vmatpush1.msra.mxu0 %v441
    %519 = vmatprep.subr.mxu0 %v444
    %520 = vmatpush1.msra.mxu0 %v443
    %521 = vmatprep.subr.mxu0 %v446
    %522 = vmatpush1.msra.mxu0 %v445
    %523 = vmatprep.subr.mxu0 %v448
    %524 = vmatpush1.msra.mxu0 %v447
    %525 = vmatprep.subr.mxu0 %v450
    %526 = vmatpush1.msra.mxu0 %v449
    %527 = vmatprep.subr.mxu0 %v452
    %528 = vmatpush1.msra.mxu0 %v451
    %529 = vmatprep.subr.mxu0 %v454
    %530 = vmatpush1.msra.mxu0 %v453
    %531 = vmatprep.subr.mxu0 %v456
    %532 = vmatpush1.msra.mxu0 %v455
    %533 = vmatprep.subr.mxu0 %v458
    %534 = vmatpush1.msra.mxu0 %v457
    %535 = vmatprep.subr.mxu0 %v460
    %536 = vmatpush1.msra.mxu0 %v459
    %537 = vmatprep.subr.mxu0 %v462
    %538 = vmatpush1.msra.mxu0 %v461
    %539 = vmatprep.subr.mxu0 %v464
    %540 = vmatpush1.msra.mxu0 %v463
    %541 = vmatprep.subr.mxu0 %v466
    %542 = vmatpush1.msra.mxu0 %v465
    %543 = vmatprep.subr.mxu0 %v468
    %544 = vmatpush1.msra.mxu0 %v467
    %545 = vmatprep.subr.mxu0 %v470
    %546 = vmatpush1.msra.mxu0 %v469
    %547 = vmatprep.subr.mxu0 %v472
    %548 = vmatpush1.msra.mxu0 %v471
    %549 = vmatprep.subr.mxu0 %v474
    %550 = vmatpush1.msra.mxu0 %v473
    %551 = vmatprep.subr.mxu0 %v476
    %552 = vmatpush1.msra.mxu0 %v475
    %553 = vmatprep.subr.mxu0 %v478
    %554 = vmatpush1.msra.mxu0 %v477
    %555 = vmatprep.subr.mxu0 %v480
    %556 = vmatpush1.msra.mxu0 %v479
    %557 = vmatprep.subr.mxu0 %v482
    %558 = vmatpush1.msra.mxu0 %v481
    %559 = vmatprep.subr.mxu0 %v484
    %560 = vmatpush1.msra.mxu0 %v483
    %561 = vmatprep.subr.mxu0 %v486
    %562 = vmatpush1.msra.mxu0 %v485
    %563 = vmatprep.subr.mxu0 %v488
    %564 = vmatpush1.msra.mxu0 %v487
    %565 = vmatprep.subr.mxu0 %v490
    %566 = vmatpush1.msra.mxu0 %v489
    %567 = vmatprep.mubr.f32.mxu0 %v277
    %568 = vmatmul.mubr.f32.gmra.mrb[0].mxu0 %v276
    %v569 = vpop.f32.mrb[0].mxu0
    %v570 = vadd.f32 %v496, %v569
    %v571 = vpop.f32.mrb[0].mxu0
    %v572 = vadd.f32 %v500, %v571
    %573 = vdwg.mxu0
    %v574 = vmax.f32 %v570, 0.0
    %v575 = vmax.f32 %v572, 0.0
    %v576 = vld [vmem:[%s7] sm:$0x3]
    %v578 = vlaneseq
    %v579 = vshrl.u32 %v578, 7
    %v580 = vsub.s32 0, %v579
    %v581 = vrot.slane %v576, %v580
    %v582 = vlaneseq
    %v583 = vshrl.u32 %v582, 7
    %v584 = vsub.s32 1, %v583
    %v585 = vrot.slane %v576, %v584
    %v588 = vmul.f32 %v425, %v581
    %v589 = vmul.f32 %v426, %v585
    %v590 = vadd.f32 %v588, %v589
    %591 = vadd.xlane.f32.xlu0 %v590
    %v592 = vpop.xlane.xlu0 %591
    %v593 = vld [vmem:[#allocation2] sm:$0x1]
    %v595 = vlaneseq
    %v596 = vshrl.u32 %v595, 7
    %v597 = vsub.s32 0, %v596
    %v598 = vrot.slane %v593, %v597
    %v600 = vadd.f32 %v592, %v598
    %vm601 = vcmask 7168
    %602 = vst.msk [vmem:[%s11] sm:$0xff] %vm601, %v600
    %v603 = vld [vmem:[%s9] sm:$0x3]
    %v605 = vlaneseq
    %v606 = vshrl.u32 %v605, 7
    %v607 = vsub.s32 0, %v606
    %v608 = vrot.slane %v603, %v607
    %v609 = vlaneseq
    %v610 = vshrl.u32 %v609, 7
    %v611 = vsub.s32 1, %v610
    %v612 = vrot.slane %v603, %v611
    %v615 = vmul.f32 %v574, %v608
    %v616 = vmul.f32 %v575, %v612
    %v617 = vadd.f32 %v615, %v616
    %618 = vadd.xlane.f32.xlu0 %v617
    %v619 = vpop.xlane.xlu0 %618
    %v620 = vld [vmem:[#allocation3] sm:$0x1]
    %v622 = vlaneseq
    %v623 = vshrl.u32 %v622, 7
    %v624 = vsub.s32 0, %v623
    %v625 = vrot.slane %v620, %v624
    %v627 = vadd.f32 %v619, %v625
    %628 = vst.msk [vmem:[%s12] sm:$0xff] %vm601, %v627
    // Predicated region
    $region62: #{tpu_custom_call.1} parent=1 // pred_check
      _
    $region63: #{tpu_custom_call.1} parent=1 // pred_check_branch
      %630 = sbr.rel (0) target = $region65
    $region64: #{tpu_custom_call.1} parent=1 // pred_region
      _
    $region65: #{tpu_custom_call.1} parent=1 // pred_fallthru
      _
    // Predicated region
    $region66: #{tpu_custom_call.1} parent=1 // pred_check
      _
    $region67: #{tpu_custom_call.1} parent=1 // pred_check_branch
      %632 = sbr.rel (0) target = $region69
    $region68: #{tpu_custom_call.1} parent=1 // pred_region
      _
    $region69: #{tpu_custom_call.1} parent=1 // pred_fallthru
      _
    // Predicated region
    $region70: #{tpu_custom_call.1} parent=1 // pred_check
      _
    $region71: #{tpu_custom_call.1} parent=1 // pred_check_branch
      %634 = sbr.rel (0) target = $region73
    $region72: #{tpu_custom_call.1} parent=1 // pred_region
      _
    $region73: #{tpu_custom_call.1} parent=1 // pred_fallthru
      _
    // Predicated region
    $region74: #{tpu_custom_call.1} parent=1 // pred_check
      _
    $region75: #{tpu_custom_call.1} parent=1 // pred_check_branch
      %636 = sbr.rel (0) target = $region77
    $region76: #{tpu_custom_call.1} parent=1 // pred_region
      _
    $region77: #{tpu_custom_call.1} parent=1 // pred_fallthru
      _
    %637 = vsyncpa [#allocation5], 1
    %638 = vsyncpa [#allocation7], 1
    %639 = vsyncpa [#allocation10], 1

</llo_original>
